<compile_context>
chip_gen: v7x
topology: tpu7x:2x2x1
jax: 0.10.0
libtpu: 0.0.40
codegen_flags: <defaults>
</compile_context>

<pallas_src>
import functools

import jax
import jax.numpy as jnp
from jax.experimental import pallas as pl
from jax.experimental.pallas import tpu as pltpu


# ---------------- Pallas kernel (fully fused hot path) ----------------

def contra_fused_kernel(p_ref, wconv_ref, wcat_ref, post_ref, out_ref, acc_ref):
    """Grid = (N, HW_tiles).  Per (n, k):
         ccam  = sigmoid(Wconv @ patches_tile)               (C, hw_tile)
         acc  += ccam @ ([Wf | Wb] / HW)_tile                (C, 2*dim)
       At the last HW tile:
         out[n] = ReLU(acc * sign + bias)   fg half: sign=+1, bias=bf
                                            bg half: sign=-1, bias=colsum(Wb)/HW + bb
    """
    k = pl.program_id(1)

    @pl.when(k == 0)
    def _init():
        acc_ref[...] = jnp.zeros_like(acc_ref)

    # conv-as-matmul + sigmoid (bf16 operands, f32 accumulation on the MXU; sigmoid on EUP)
    conv = jnp.dot(wconv_ref[...], p_ref[0], preferred_element_type=jnp.float32)
    ccam = jax.nn.sigmoid(conv).astype(wcat_ref.dtype)               # (C, hw_tile)

    # merged fg/bg matmul, contraction over this HW tile (standard MXU orientation)
    acc_ref[...] += jnp.dot(ccam, wcat_ref[...],
                            preferred_element_type=jnp.float32)      # (C, 2*dim)

    @pl.when(k == pl.num_programs(1) - 1)
    def _finalize():
        post = post_ref[...]                                         # (2, 2*dim) f32
        z = acc_ref[...] * post[0:1, :] + post[1:2, :]
        out_ref[0] = jnp.maximum(z, 0.0).astype(out_ref.dtype)


# ---------------- wrappers / glue ----------------

def _pick_hw_tile(hw, max_tile=512):
    """Largest multiple of 128 <= max_tile that divides hw (lane-dim constraint of the
    patch / weight blocks); falls back to a single full-HW block.  max_tile=512 fits
    comfortably in v7x's 64 MiB VMEM; v6e/v5e (128 MiB) can use larger tiles."""
    if hw % 128 != 0:
        return hw
    t = min(max_tile - max_tile % 128, hw)
    while t >= 128:
        if hw % t == 0:
            return t
        t -= 128
    return hw


def im2col_stride2_pad1(x):
    """x: (N, C, H, W) -> patches (N, C*9, Hout*Wout); matches torch Conv2d(k=3, s=2, p=1).
    Row index = cin*9 + kh*3 + kw, matching w_conv.reshape(C, C*9) column order."""
    N, C, H, W = x.shape
    Hout = (H - 1) // 2 + 1
    Wout = (W - 1) // 2 + 1
    xp = jnp.pad(x, ((0, 0), (0, 0), (1, 1), (1, 1)))
    taps = []
    for kh in range(3):
        for kw in range(3):
            taps.append(xp[:, :, kh:kh + 2 * Hout:2, kw:kw + 2 * Wout:2])  # (N,C,Hout,Wout)
    p = jnp.stack(taps, axis=2)                  # (N, C, 9, Hout, Wout); k index = kh*3+kw
    return p.reshape(N, C * 9, Hout * Wout), Hout, Wout


def contra_module_forward(x, params, *, hw_tile=None, compute_dtype=jnp.bfloat16):
    """Replicates ContraModule.forward. x: (N, C, H, W) f32. Returns (fg, bg): (N, C, dim)."""
    N, C, H, W = x.shape
    dim = params["wf"].shape[1]

    # ---- host-side glue (layout only; no transposes needed) ----
    patches, Hout, Wout = im2col_stride2_pad1(x)            # (N, C*9, HW)
    HW = Hout * Wout
    inv_hw = 1.0 / HW

    wconv_flat = params["w_conv"].reshape(C, C * 9)          # (C, C*9), col = cin*9+kh*3+kw
    # Merged, pre-scaled MLP weight: [Wf | Wb] / HW, contraction axis (HW) leading.
    wcat = jnp.concatenate([params["wf"], params["wb"]], axis=1) * inv_hw   # (HW, 2*dim)
    # Epilogue constants (f32): fg half (+1, bf); bg half (-1, colsum(Wb)/HW + bb).
    sign = jnp.concatenate([jnp.ones((dim,), jnp.float32), -jnp.ones((dim,), jnp.float32)])
    cb = jnp.sum(params["wb"], axis=0) * inv_hw + params["bb"][0]
    bias = jnp.concatenate([params["bf"][0], cb]).astype(jnp.float32)
    post = jnp.stack([sign, bias], axis=0)                    # (2, 2*dim)

    # bf16 operands for the MXU; accumulation stays f32 inside the kernel.
    patches = patches.astype(compute_dtype)
    wconv_flat = wconv_flat.astype(compute_dtype)
    wcat = wcat.astype(compute_dtype)

    if hw_tile is None:
        hw_tile = _pick_hw_tile(HW)
    assert HW % hw_tile == 0 and (hw_tile == HW or hw_tile % 128 == 0), (HW, hw_tile)
    kt = HW // hw_tile
    CK = C * 9
    D2 = 2 * dim

    cost = pl.CostEstimate(
        flops=2 * N * HW * CK * C + 2 * N * HW * C * D2,
        transcendentals=N * HW * C,
        bytes_accessed=int(patches.size * patches.dtype.itemsize
                           + N * wcat.size * wcat.dtype.itemsize
                           + N * C * D2 * 4),
    )

    out = pl.pallas_call(
        contra_fused_kernel,
        out_shape=jax.ShapeDtypeStruct((N, C, D2), jnp.float32),
        grid=(N, kt),
        in_specs=[
            pl.BlockSpec((1, CK, hw_tile), lambda n, k: (n, 0, k)),   # im2col patch tile
            pl.BlockSpec((C, CK), lambda n, k: (0, 0)),               # conv weight (resident)
            pl.BlockSpec((hw_tile, D2), lambda n, k: (k, 0)),         # [Wf|Wb]/HW tile
            pl.BlockSpec((2, D2), lambda n, k: (0, 0)),               # sign / bias constants
        ],
        out_specs=pl.BlockSpec((1, C, D2), lambda n, k: (n, 0, 0)),
        scratch_shapes=[pltpu.VMEM((C, D2), jnp.float32)],
        compiler_params=pltpu.CompilerParams(
            dimension_semantics=("parallel", "arbitrary"),
            vmem_limit_bytes=32 * 1024 * 1024),
        cost_estimate=cost,
    )(patches, wconv_flat, wcat, post)

    fg = out[:, :, :dim]                                      # (N, C, dim) — pure slice
    bg = out[:, :, dim:]                                      # (N, C, dim) — pure slice
    return fg, bg


def init_params(key, channel, hw, dim):
    """Deterministic synthetic parameters matching the module's shapes.
    NOTE: the torch module hard-codes Linear(128*128, dim); here in_features = Hout*Wout of
    the conv output (hw), which is what the forward pass requires to be consistent."""
    k1, k2, k3, k4, k5 = jax.random.split(key, 5)
    w_conv = 0.1 * jax.random.normal(k1, (channel, channel, 3, 3), jnp.float32)
    wf = 0.05 * jax.random.normal(k2, (hw, dim), jnp.float32)   # transposed Linear weight
    bf = 0.05 * jax.random.normal(k3, (1, dim), jnp.float32)
    wb = 0.05 * jax.random.normal(k4, (hw, dim), jnp.float32)
    bb = 0.05 * jax.random.normal(k5, (1, dim), jnp.float32)
    return {"w_conv": w_conv, "wf": wf, "bf": bf, "wb": wb, "bb": bb}


if __name__ == "__main__":
    # Small shapes consistent with the forward pass:
    # x: (N=2, C=4, H=32, W=32) -> conv (k=3, s=2, p=1) -> (2, 4, 16, 16) -> HW = 256, dim = 32.
    # hw_tile=128 so the HW-reduction grid axis has 2 steps (exercises the accumulator path).
    N, C, H, W, dim = 2, 4, 32, 32, 32
    Hout, Wout = (H - 1) // 2 + 1, (W - 1) // 2 + 1

    key = jax.random.PRNGKey(0)
    kx, kp = jax.random.split(key)
    x = jax.random.normal(kx, (N, C, H, W), jnp.float32)
    params = init_params(kp, C, Hout * Wout, dim)

    fwd = jax.jit(functools.partial(contra_module_forward, hw_tile=128))
    fg, bg = fwd(x, params)
    jax.block_until_ready((fg, bg))

    # Reference in plain JAX (f32).  Kernel uses bf16 MXU operands with f32 accumulation,
    # so tolerance is relaxed accordingly.
    def ref_forward(x, p):
        out = jax.lax.conv_general_dilated(
            x, p["w_conv"], window_strides=(2, 2), padding=((1, 1), (1, 1)),
            dimension_numbers=("NCHW", "OIHW", "NCHW"))
        ccam = jax.nn.sigmoid(out)
        n, c, h, w = ccam.shape
        ccam_ = ccam.reshape(n, c, h * w)
        fg_in = ccam_ / (h * w)
        bg_in = (1 - ccam_) / (h * w)
        fg_r = jnp.maximum(jnp.einsum("ncx,xd->ncd", fg_in, p["wf"]) + p["bf"][0], 0.0)
        bg_r = jnp.maximum(jnp.einsum("ncx,xd->ncd", bg_in, p["wb"]) + p["bb"][0], 0.0)
        return fg_r, bg_r

    fg_ref, bg_ref = ref_forward(x, params)
    assert fg.shape == (N, C, dim) and bg.shape == (N, C, dim)
    assert jnp.allclose(fg, fg_ref, atol=5e-3), "fg mismatch"
    assert jnp.allclose(bg, bg_ref, atol=5e-3), "bg mismatch"

    print("KERNEL_OK")
</pallas_src>

<mosaic_0001>
module attributes {stable_mosaic.version = 11 : i64} {
  func.func @contra_fused_kernel(%arg0: i32, %arg1: i32, %arg2: memref<1x36x128xbf16, #tpu.memory_space<vmem>>, %arg3: memref<4x36xbf16, #tpu.memory_space<vmem>>, %arg4: memref<128x64xbf16, #tpu.memory_space<vmem>>, %arg5: memref<2x64xf32, #tpu.memory_space<vmem>>, %arg6: memref<1x4x64xf32, #tpu.memory_space<vmem>>, %arg7: memref<4x64xf32, #tpu.memory_space<vmem>>) attributes {dimension_semantics = [#tpu.dimension_semantics<parallel>, #tpu.dimension_semantics<arbitrary>], iteration_bounds = array<i64: 2, 2>, scalar_prefetch = 0 : i64, scratch_operands = 1 : i64, tpu.core_type = #tpu.core_type<tc>, window_params = [{transform_indices = @transform_0, window_bounds = array<i64: 1, 36, 128>}, {pipeline_mode = #tpu.pipeline_mode<synchronous>, transform_indices = @transform_1, window_bounds = array<i64: 4, 36>}, {transform_indices = @transform_2, window_bounds = array<i64: 128, 64>}, {pipeline_mode = #tpu.pipeline_mode<synchronous>, transform_indices = @transform_3, window_bounds = array<i64: 2, 64>}, {transform_indices = @transform_4, window_bounds = array<i64: 1, 4, 64>}]} {
    %c0_i32 = arith.constant 0 : i32
    %0 = arith.cmpi eq, %arg1, %c0_i32 : i32
    %1 = arith.extui %0 : i1 to i32
    %c0_i32_0 = arith.constant 0 : i32
    %2 = arith.cmpi ne, %1, %c0_i32_0 : i32
    scf.if %2 {
      %cst_14 = arith.constant 0.000000e+00 : f32
      %21 = vector.broadcast %cst_14 : f32 to vector<4x64xf32>
      %c0_15 = arith.constant 0 : index
      %c0_16 = arith.constant 0 : index
      %22 = vector.load %arg7[%c0_15, %c0_16] : memref<4x64xf32, #tpu.memory_space<vmem>>, vector<4x64xf32>
      tpu.vector_store %arg7[%c0_15, %c0_16], %21 {strides = array<i32>} : memref<4x64xf32, #tpu.memory_space<vmem>>, vector<4x64xf32>,
    } else {
    }
    %c0 = arith.constant 0 : index
    %c0_1 = arith.constant 0 : index
    %3 = vector.load %arg3[%c0, %c0_1] : memref<4x36xbf16, #tpu.memory_space<vmem>>, vector<4x36xbf16>
    %c0_2 = arith.constant 0 : index
    %c0_3 = arith.constant 0 : index
    %c0_4 = arith.constant 0 : index
    %4 = vector.load %arg2[%c0_2, %c0_3, %c0_4] : memref<1x36x128xbf16, #tpu.memory_space<vmem>>, vector<1x36x128xbf16>
    %5 = vector.shape_cast %4 : vector<1x36x128xbf16> to vector<36x128xbf16>
    %cst = arith.constant dense<0.000000e+00> : vector<4x128xf32>
    %6 = tpu.matmul %3, %5, %cst {dimension_numbers = #tpu.dot_dimension_numbers<[1], [0], [0], [1], [0, 0, 1, 1], [], []>} : vector<4x36xbf16>, vector<36x128xbf16>, vector<4x128xf32> -> vector<4x128xf32>
    %7 = arith.negf %6 : vector<4x128xf32>
    %8 = math.exp %7 : vector<4x128xf32>
    %cst_5 = arith.constant 1.000000e+00 : f32
    %9 = vector.broadcast %cst_5 : f32 to vector<4x128xf32>
    %10 = arith.addf %9, %8 : vector<4x128xf32>
    %11 = arith.divf %9, %10 : vector<4x128xf32>
    %12 = arith.truncf %11 : vector<4x128xf32> to vector<4x128xbf16>
    %c0_6 = arith.constant 0 : index
    %c0_7 = arith.constant 0 : index
    %13 = vector.load %arg7[%c0_6, %c0_7] : memref<4x64xf32, #tpu.memory_space<vmem>>, vector<4x64xf32>
    %c0_8 = arith.constant 0 : index
    %c0_9 = arith.constant 0 : index
    %14 = vector.load %arg4[%c0_8, %c0_9] : memref<128x64xbf16, #tpu.memory_space<vmem>>, vector<128x64xbf16>
    %cst_10 = arith.constant dense<0.000000e+00> : vector<4x64xf32>
    %15 = tpu.matmul %12, %14, %cst_10 {dimension_numbers = #tpu.dot_dimension_numbers<[1], [0], [0], [1], [0, 0, 1, 1], [], []>} : vector<4x128xbf16>, vector<128x64xbf16>, vector<4x64xf32> -> vector<4x64xf32>
    %16 = arith.addf %13, %15 : vector<4x64xf32>
    %c0_11 = arith.constant 0 : index
    %c0_12 = arith.constant 0 : index
    %17 = vector.load %arg7[%c0_11, %c0_12] : memref<4x64xf32, #tpu.memory_space<vmem>>, vector<4x64xf32>
    tpu.vector_store %arg7[%c0_11, %c0_12], %16 {strides = array<i32>} : memref<4x64xf32, #tpu.memory_space<vmem>>, vector<4x64xf32>,
    %c1_i32 = arith.constant 1 : i32
    %18 = arith.cmpi eq, %arg1, %c1_i32 : i32
    %19 = arith.extui %18 : i1 to i32
    %c0_i32_13 = arith.constant 0 : i32
    %20 = arith.cmpi ne, %19, %c0_i32_13 : i32
    scf.if %20 {
      %c0_14 = arith.constant 0 : index
      %c0_15 = arith.constant 0 : index
      %21 = vector.load %arg5[%c0_14, %c0_15] : memref<2x64xf32, #tpu.memory_space<vmem>>, vector<2x64xf32>
      %c0_16 = arith.constant 0 : index
      %c0_17 = arith.constant 0 : index
      %22 = vector.load %arg7[%c0_16, %c0_17] : memref<4x64xf32, #tpu.memory_space<vmem>>, vector<4x64xf32>
      %23 = vector.extract_strided_slice %21 {offsets = [0, 0], sizes = [1, 64], strides = [1, 1]} : vector<2x64xf32> to vector<1x64xf32>
      %24 = vector.broadcast %23 : vector<1x64xf32> to vector<4x64xf32>
      %25 = arith.mulf %22, %24 : vector<4x64xf32>
      %26 = vector.extract_strided_slice %21 {offsets = [1, 0], sizes = [1, 64], strides = [1, 1]} : vector<2x64xf32> to vector<1x64xf32>
      %27 = vector.broadcast %26 : vector<1x64xf32> to vector<4x64xf32>
      %28 = arith.addf %25, %27 : vector<4x64xf32>
      %cst_18 = arith.constant 0.000000e+00 : f32
      %29 = vector.broadcast %cst_18 : f32 to vector<4x64xf32>
      %30 = arith.maximumf %28, %29 : vector<4x64xf32>
      %c0_19 = arith.constant 0 : index
      %c0_20 = arith.constant 0 : index
      %c0_21 = arith.constant 0 : index
      %31 = vector.load %arg6[%c0_19, %c0_20, %c0_21] : memref<1x4x64xf32, #tpu.memory_space<vmem>>, vector<1x4x64xf32>
      %32 = vector.shape_cast %31 : vector<1x4x64xf32> to vector<4x64xf32>
      %33 = vector.shape_cast %30 : vector<4x64xf32> to vector<1x4x64xf32>
      tpu.vector_store %arg6[%c0_19, %c0_20, %c0_21], %33 {strides = array<i32>} : memref<1x4x64xf32, #tpu.memory_space<vmem>>, vector<1x4x64xf32>,
    } else {
    }
    return
  }
  func.func @transform_0(%arg0: i32, %arg1: i32) -> (i32, i32, i32) {
    %c0_i32 = arith.constant 0 : i32
    %c0_i32_0 = arith.constant 0 : i32
    return %arg0, %c0_i32, %arg1 : i32, i32, i32
  }
  func.func @transform_1(%arg0: i32, %arg1: i32) -> (i32, i32) {
    %c0_i32 = arith.constant 0 : i32
    %c0_i32_0 = arith.constant 0 : i32
    %c0_i32_1 = arith.constant 0 : i32
    return %c0_i32, %c0_i32_0 : i32, i32
  }
  func.func @transform_2(%arg0: i32, %arg1: i32) -> (i32, i32) {
    %c0_i32 = arith.constant 0 : i32
    %c0_i32_0 = arith.constant 0 : i32
    return %arg1, %c0_i32 : i32, i32
  }
  func.func @transform_3(%arg0: i32, %arg1: i32) -> (i32, i32) {
    %c0_i32 = arith.constant 0 : i32
    %c0_i32_0 = arith.constant 0 : i32
    %c0_i32_1 = arith.constant 0 : i32
    return %c0_i32, %c0_i32_0 : i32, i32
  }
  func.func @transform_4(%arg0: i32, %arg1: i32) -> (i32, i32, i32) {
    %c0_i32 = arith.constant 0 : i32
    %c0_i32_0 = arith.constant 0 : i32
    %c0_i32_1 = arith.constant 0 : i32
    return %arg0, %c0_i32, %c0_i32_0 : i32, i32, i32
  }
}

</mosaic_0001>

<llo_original>
// kernel: contra_module_forward.1
$region0: #{contra_module_forward.1}
  #allocation0 [shape = 'u32[]', space=smem, size = 0x4, offset = 0x4, fixed_abs, tag = 'smem constant byte address 0x4 - core index']
  #allocation1 [shape = 'u32[144,128]{1,0:T(1,128)}', space=vmem, size = 0x12000, scoped, tag = 'internal scratch']
  #allocation2 [shape = 'f32[4,64]{1,0:T(4,128)}', space=vmem, size = 0x800, scoped, tag = 'scratch operand']
  %s0 = inlined_call_operand.vmem [shape: bf16[2,36,256], index: 0, kind: input, shape index: {}]
  %s1 = inlined_call_operand.vmem [shape: bf16[4,36], index: 1, kind: input, shape index: {}]
  %s2 = inlined_call_operand.vmem [shape: bf16[256,64], index: 2, kind: input, shape index: {}]
  %s3 = inlined_call_operand.vmem [shape: f32[2,64], index: 3, kind: input, shape index: {}]
  %s4 = inlined_call_operand.vmem [shape: f32[2,4,64], index: 4, kind: output, shape index: {}]
  %s5 = sld [smem:[#allocation0]]
  $region98: #{contra_module_forward.1} parent=0
    _
  %s7 = ssub.s32 1, %s5
  %s8 = scalar_select 0, %s7, %s5
  $region1: #{contra_module_forward.1} parent=0
    #allocation3 [shape = 'u8[20480]{0}', space=vmem, size = 0x5000, scoped, tag = 'input window, operand 0']
    loop: start=0, step=1, limit=6
    $region2: #{contra_module_forward.1} parent=1 // loop_pre_header
      _
    $region3: #{contra_module_forward.1} parent=1 // loop_header
      %s10 = sphi 0, %s14
      %p11 = scmp.ge.s32.totalorder %s10, 6
      %s17 = sphi 0, %s29
      %s18 = sphi 0, %s25
      %s19 = sphi 0, %s17
      %s20 = sphi 0, %s18
      %s21 = sphi 0, %s19
      %s22 = sphi 0, %s20
      %s34 = sphi 0, %s36
      %s37 = sphi 0, %s34
      %s38 = sphi 0, %s37
      %s54 = sphi 0, %s38
      %s58 = sphi 0, %s58
      %s60 = sphi 0, %s58
      %s61 = sphi 0, %s60
      %s75 = sphi 0, %s61
      %s81 = sphi 0, %s83
      %s84 = sphi 0, %s81
      %s85 = sphi 0, %s84
      %s101 = sphi 0, %s85
      %s105 = sphi 0, %s105
      %s107 = sphi 0, %s105
      %s108 = sphi 0, %s107
      %s122 = sphi 0, %s108
      %s128 = sphi 0, %s130
      %s131 = sphi 0, %s128
      %s132 = sphi 0, %s131
      %s148 = sphi 0, %s132
    $region4: #{contra_module_forward.1} parent=1 // loop_header_branch
      %13 = sbr.rel (%p11) target = $region8
    $region5: #{contra_module_forward.1} parent=1 // loop_body
      %s15 = ssub.s32 %s10, 1
      %s16 = ssub.s32 %s10, 2
      %s23 = sadd.s32 1, %s18
      %p24 = scmp.ge.s32.totalorder %s23, 2
      %s25 = scalar_select %p24, 0, %s23
      %s26 = sadd.s32 1, %s17
      %s27 = scalar_select %p24, %s26, %s17
      %p28 = scmp.ge.s32.totalorder %s27, 2
      %s29 = scalar_select %p28, 0, %s27
      %s30 = ssub.s32 %s17, %s29
      %s31 = ssub.s32 %s18, %s25
      %s32 = sor.u32 %s30, %s31
      %p33 = scmp.eq.s32.totalorder %s32, 0
      %s35 = sadd.s32 %s34, 1
      %s36 = scalar_select %p33, %s34, %s35
      %p39 = pneg %p33
      %p40 = scmp.eq.s32.totalorder %s10, 3
      %p41 = por %p39, %p40
      %p42 = scmp.ne.s32.totalorder %s34, %s37
      %p43 = scmp.eq.s32.totalorder %s10, 0
      %p44 = por %p42, %p43
      %p45 = scmp.ne.s32.totalorder %s34, %s37
      %p46 = scmp.eq.s32.totalorder %s15, 3
      %p47 = por %p45, %p46
      %p48 = scmp.ne.s32.totalorder %s37, %s38
      %p49 = scmp.eq.s32.totalorder %s15, 0
      %p50 = por %p48, %p49
      %p51 = scmp.ne.s32.totalorder %s37, %s38
      %p52 = scmp.eq.s32.totalorder %s16, 3
      %p53 = por %p51, %p52
      %p55 = scmp.ne.s32.totalorder %s38, %s54
      %p56 = scmp.eq.s32.totalorder %s16, 0
      %p57 = por %p55, %p56
      %s59 = sadd.s32 %s58, 1
      %p62 = scmp.eq.s32.totalorder %s10, 3
      %p63 = scmp.ne.s32.totalorder %s58, %s60
      %p64 = scmp.eq.s32.totalorder %s10, 0
      %p65 = por %p63, %p64
      %p66 = scmp.ne.s32.totalorder %s58, %s60
      %p67 = scmp.eq.s32.totalorder %s15, 3
      %p68 = por %p66, %p67
      %p69 = scmp.ne.s32.totalorder %s60, %s61
      %p70 = scmp.eq.s32.totalorder %s15, 0
      %p71 = por %p69, %p70
      %p72 = scmp.ne.s32.totalorder %s60, %s61
      %p73 = scmp.eq.s32.totalorder %s16, 3
      %p74 = por %p72, %p73
      %p76 = scmp.ne.s32.totalorder %s61, %s75
      %p77 = scmp.eq.s32.totalorder %s16, 0
      %p78 = por %p76, %p77
      %s79 = ssub.s32 %s18, %s25
      %p80 = scmp.eq.s32.totalorder %s79, 0
      %s82 = sadd.s32 %s81, 1
      %s83 = scalar_select %p80, %s81, %s82
      %p86 = pneg %p80
      %p87 = scmp.eq.s32.totalorder %s10, 3
      %p88 = por %p86, %p87
      %p89 = scmp.ne.s32.totalorder %s81, %s84
      %p90 = scmp.eq.s32.totalorder %s10, 0
      %p91 = por %p89, %p90
      %p92 = scmp.ne.s32.totalorder %s81, %s84
      %p93 = scmp.eq.s32.totalorder %s15, 3
      %p94 = por %p92, %p93
      %p95 = scmp.ne.s32.totalorder %s84, %s85
      %p96 = scmp.eq.s32.totalorder %s15, 0
      %p97 = por %p95, %p96
      %p98 = scmp.ne.s32.totalorder %s84, %s85
      %p99 = scmp.eq.s32.totalorder %s16, 3
      %p100 = por %p98, %p99
      %p102 = scmp.ne.s32.totalorder %s85, %s101
      %p103 = scmp.eq.s32.totalorder %s16, 0
      %p104 = por %p102, %p103
      %s106 = sadd.s32 %s105, 1
      %p109 = scmp.eq.s32.totalorder %s10, 3
      %p110 = scmp.ne.s32.totalorder %s105, %s107
      %p111 = scmp.eq.s32.totalorder %s10, 0
      %p112 = por %p110, %p111
      %p113 = scmp.ne.s32.totalorder %s105, %s107
      %p114 = scmp.eq.s32.totalorder %s15, 3
      %p115 = por %p113, %p114
      %p116 = scmp.ne.s32.totalorder %s107, %s108
      %p117 = scmp.eq.s32.totalorder %s15, 0
      %p118 = por %p116, %p117
      %p119 = scmp.ne.s32.totalorder %s107, %s108
      %p120 = scmp.eq.s32.totalorder %s16, 3
      %p121 = por %p119, %p120
      %p123 = scmp.ne.s32.totalorder %s108, %s122
      %p124 = scmp.eq.s32.totalorder %s16, 0
      %p125 = por %p123, %p124
      %s126 = ssub.s32 %s17, %s29
      %p127 = scmp.eq.s32.totalorder %s126, 0
      %s129 = sadd.s32 %s128, 1
      %s130 = scalar_select %p127, %s128, %s129
      %p133 = pneg %p127
      %p134 = scmp.eq.s32.totalorder %s10, 3
      %p135 = por %p133, %p134
      %p136 = scmp.ne.s32.totalorder %s128, %s131
      %p137 = scmp.eq.s32.totalorder %s10, 0
      %p138 = por %p136, %p137
      %p139 = scmp.ne.s32.totalorder %s128, %s131
      %p140 = scmp.eq.s32.totalorder %s15, 3
      %p141 = por %p139, %p140
      %p142 = scmp.ne.s32.totalorder %s131, %s132
      %p143 = scmp.eq.s32.totalorder %s15, 0
      %p144 = por %p142, %p143
      %p145 = scmp.ne.s32.totalorder %s131, %s132
      %p146 = scmp.eq.s32.totalorder %s16, 3
      %p147 = por %p145, %p146
      %p149 = scmp.ne.s32.totalorder %s132, %s148
      %p150 = scmp.eq.s32.totalorder %s16, 0
      %p151 = por %p149, %p150
      %p152 = scmp.le.s32.totalorder 1, %s10
      %p153 = scmp.lt.s32.totalorder %s10, 5
      %p154 = pnand %p152, %p153
      %p155 = pneg %p154
      // Predicated region
      $region9: #{contra_module_forward.1} parent=5 // pred_check
        _
      $region10: #{contra_module_forward.1} parent=5 // pred_check_branch
        %157 = sbr.rel (%p154) target = $region12
      $region11: #{contra_module_forward.1} parent=5 // pred_region
        %s158 = ssub.s32 %s10, 1
        // Predicated region
        $region13: #{contra_module_forward.1} parent=11 // pred_check
          %p159 = pneg %p71
        $region14: #{contra_module_forward.1} parent=11 // pred_check_branch
          %161 = sbr.rel (%p159) target = $region16
        $region15: #{contra_module_forward.1} parent=11 // pred_region
          _
        $region16: #{contra_module_forward.1} parent=11 // pred_fallthru
          _
        // Predicated region
        $region17: #{contra_module_forward.1} parent=11 // pred_check
          %p162 = pneg %p118
        $region18: #{contra_module_forward.1} parent=11 // pred_check_branch
          %164 = sbr.rel (%p162) target = $region20
        $region19: #{contra_module_forward.1} parent=11 // pred_region
          _
        $region20: #{contra_module_forward.1} parent=11 // pred_fallthru
          _
      $region12: #{contra_module_forward.1} parent=5 // pred_fallthru
        _
      %p165 = scmp.lt.s32.totalorder %s10, 4
      // Predicated region
      $region21: #{contra_module_forward.1} parent=5 // pred_check
        %p166 = pneg %p165
      $region22: #{contra_module_forward.1} parent=5 // pred_check_branch
        %168 = sbr.rel (%p166) target = $region24
      $region23: #{contra_module_forward.1} parent=5 // pred_region
        // Predicated region
        $region25: #{contra_module_forward.1} parent=23 // pred_check
          %p169 = pneg %p44
        $region26: #{contra_module_forward.1} parent=23 // pred_check_branch
          %171 = sbr.rel (%p169) target = $region28
        $region27: #{contra_module_forward.1} parent=23 // pred_region
          %s172 = sand.u32 %s34, 1
          %s173 = sand.u32 %s34, 1
          %s174 = smul.addr %s173, 20
          %s175 = scalar_lea.vmem [#allocation3], %s174
          %s176 = smul.addr %s17, 10
          %s177 = sadd.s32 %s18, %s176
          %s178 = smul.addr %s177, 4
          %s179 = scalar_lea.vmem %s0, %s178
          // Predicated region
          $region29: #{contra_module_forward.1} parent=27 // pred_check
            _
          $region30: #{contra_module_forward.1} parent=27 // pred_check_branch
            %181 = sbr.rel (0) target = $region32
          $region31: #{contra_module_forward.1} parent=27 // pred_region
            // Predicated region
            $region33: #{contra_module_forward.1} parent=31 // pred_check
              _
            $region34: #{contra_module_forward.1} parent=31 // pred_check_branch
              %183 = sbr.rel target = $region36
            $region35: #{contra_module_forward.1} parent=31 // pred_region
              // Predicated region
              $region48: #{contra_module_forward.1} parent=35 // pred_check
                _
              $region49: #{contra_module_forward.1} parent=35 // pred_check_branch
                %206 = sbr.rel (0) target = $region51
              $region50: #{contra_module_forward.1} parent=35 // pred_region
                loop: start=0, step=1, limit=1
                $region52: #{contra_module_forward.1} parent=50 // loop_pre_header
                  _
                $region53: #{contra_module_forward.1} parent=50 // loop_header
                  %s208 = sphi 0, %s212
                  %p209 = scmp.ge.s32.totalorder %s208, 1
                  %s213 = sphi %s179, %s179
                  %s214 = sphi %s175, %s175
                $region54: #{contra_module_forward.1} parent=50 // loop_header_branch
                  %211 = sbr.rel (%p209) target = $region58
                $region55: #{contra_module_forward.1} parent=50 // loop_body
                  _
                $region56: #{contra_module_forward.1} parent=50 // loop_footer
                  %s212 = sadd.s32 1, %s208
                $region57: #{contra_module_forward.1} parent=50 // loop_footer_branch
                  %207 = sbr.rel target = $region53
                $region58: #{contra_module_forward.1} parent=50 // loop_exit
                  _
                loop: start=0, step=1, limit=1
                $region59: #{contra_module_forward.1} parent=50 // loop_pre_header
                  _
                $region60: #{contra_module_forward.1} parent=50 // loop_header
                  %s217 = sphi 0, %s221
                  %p218 = scmp.ge.s32.totalorder %s217, 1
                  %s222 = sphi %s179, %s179
                  %s223 = sphi %s175, %s175
                $region61: #{contra_module_forward.1} parent=50 // loop_header_branch
                  %220 = sbr.rel (%p218) target = $region65
                $region62: #{contra_module_forward.1} parent=50 // loop_body
                  %v224 = vld [vmem:[%s222] sm:$0xf]
                  %225 = vst [vmem:[%s223] sm:$0xf] %v224
                  %v226 = vld [vmem:[%s222 + $0x8] sm:$0xf]
                  %227 = vst [vmem:[%s223 + $0x4] sm:$0xf] %v226
                  %v228 = vld [vmem:[%s222 + $0x10] sm:$0xf]
                  %229 = vst [vmem:[%s223 + $0x8] sm:$0xf] %v228
                  %v230 = vld [vmem:[%s222 + $0x18] sm:$0xf]
                  %231 = vst [vmem:[%s223 + $0xc] sm:$0xf] %v230
                  %v232 = vld [vmem:[%s222 + $0x20] sm:$0xf]
                  %233 = vst [vmem:[%s223 + $0x10] sm:$0xf] %v232
                $region63: #{contra_module_forward.1} parent=50 // loop_footer
                  %s221 = sadd.s32 1, %s217
                $region64: #{contra_module_forward.1} parent=50 // loop_footer_branch
                  %216 = sbr.rel target = $region60
                $region65: #{contra_module_forward.1} parent=50 // loop_exit
                  _
              $region51: #{contra_module_forward.1} parent=35 // pred_fallthru
                _
            $region36: #{contra_module_forward.1} parent=31 // pred_fallthru
              _
            // Predicated region
            $region37: #{contra_module_forward.1} parent=31 // pred_check
              _
            $region38: #{contra_module_forward.1} parent=31 // pred_check_branch
              %185 = sbr.rel (0) target = $region40
            $region39: #{contra_module_forward.1} parent=31 // pred_region
              loop: start=0, step=1, limit=1
              $region41: #{contra_module_forward.1} parent=39 // loop_pre_header
                _
              $region42: #{contra_module_forward.1} parent=39 // loop_header
                %s188 = sphi 0, %s192
                %p189 = scmp.ge.s32.totalorder %s188, 1
                %s193 = sphi %s179, %s179
                %s194 = sphi %s175, %s175
              $region43: #{contra_module_forward.1} parent=39 // loop_header_branch
                %191 = sbr.rel (%p189) target = $region47
              $region44: #{contra_module_forward.1} parent=39 // loop_body
                %v195 = vld [vmem:[%s193] sm:$0xf]
                %196 = vst [vmem:[%s194] sm:$0xf] %v195
                %v197 = vld [vmem:[%s193 + $0x8] sm:$0xf]
                %198 = vst [vmem:[%s194 + $0x4] sm:$0xf] %v197
                %v199 = vld [vmem:[%s193 + $0x10] sm:$0xf]
                %200 = vst [vmem:[%s194 + $0x8] sm:$0xf] %v199
                %v201 = vld [vmem:[%s193 + $0x18] sm:$0xf]
                %202 = vst [vmem:[%s194 + $0xc] sm:$0xf] %v201
                %v203 = vld [vmem:[%s193 + $0x20] sm:$0xf]
                %204 = vst [vmem:[%s194 + $0x10] sm:$0xf] %v203
              $region45: #{contra_module_forward.1} parent=39 // loop_footer
                %s192 = sadd.s32 1, %s188
              $region46: #{contra_module_forward.1} parent=39 // loop_footer_branch
                %187 = sbr.rel target = $region42
              $region47: #{contra_module_forward.1} parent=39 // loop_exit
                _
            $region40: #{contra_module_forward.1} parent=31 // pred_fallthru
              _
          $region32: #{contra_module_forward.1} parent=27 // pred_fallthru
            _
          %234 = vnop
        $region28: #{contra_module_forward.1} parent=23 // pred_fallthru
          _
        // Predicated region
        $region66: #{contra_module_forward.1} parent=23 // pred_check
          %p235 = pneg %p91
        $region67: #{contra_module_forward.1} parent=23 // pred_check_branch
          %237 = sbr.rel (%p235) target = $region69
        $region68: #{contra_module_forward.1} parent=23 // pred_region
          %s238 = smul.u32 16, %s18
          %p239 = scmp.lt.s32.totalorder %s238, 31
          %s240 = scalar_select %p239, %s238, 31
          %s241 = smul.addr %s240, 4
          %s242 = scalar_lea.vmem %s2, %s241
          %s243 = smul.u32 16, %s18
        $region69: #{contra_module_forward.1} parent=23 // pred_fallthru
          _
      $region24: #{contra_module_forward.1} parent=5 // pred_fallthru
        _
      %p244 = scmp.le.s32.totalorder 1, %s10
      %p245 = scmp.lt.s32.totalorder %s10, 5
      %p246 = pnand %p244, %p245
      %p247 = pneg %p246
      // Predicated region
      $region70: #{contra_module_forward.1} parent=5 // pred_check
        _
      $region71: #{contra_module_forward.1} parent=5 // pred_check_branch
        %249 = sbr.rel (%p246) target = $region73
      $region72: #{contra_module_forward.1} parent=5 // pred_region
        %s250 = ssub.s32 %s10, 1
        %s251 = sand.u32 %s37, 1
        %s252 = sand.u32 %s37, 1
        %s253 = smul.addr %s252, 20
        %s254 = scalar_lea.vmem [#allocation3], %s253
        // Predicated region
        $region74: #{contra_module_forward.1} parent=72 // pred_check
          %p255 = pneg %p50
        $region75: #{contra_module_forward.1} parent=72 // pred_check_branch
          %257 = sbr.rel (%p255) target = $region77
        $region76: #{contra_module_forward.1} parent=72 // pred_region
          _
        $region77: #{contra_module_forward.1} parent=72 // pred_fallthru
          _
        %s258 = sand.u32 %s37, 1
        %s259 = sand.u32 %s37, 1
        %s260 = smul.addr %s259, 20
        %s261 = scalar_lea.vmem [#allocation3], %s260
        %p262 = pneg %p50
        %p263 = pneg %p47
        %p264 = pneg %p71
        %p265 = pneg %p68
        %s266 = smul.u32 16, %s20
        %p267 = scmp.lt.s32.totalorder %s266, 31
        %s268 = scalar_select %p267, %s266, 31
        %s269 = smul.addr %s268, 4
        %s270 = scalar_lea.vmem %s2, %s269
        %p271 = pneg %p97
        %p272 = pneg %p94
        %p273 = pneg %p118
        %p274 = pneg %p115
        %p275 = pneg %p144
        %p276 = pneg %p141
        %p277 = scmp.lt.s32.totalorder %s19, 1
        %s278 = scalar_select %p277, %s19, 1
        %s279 = smul.addr %s278, 4
        %s280 = scalar_lea.vmem %s4, %s279
        %s281 = smul.u32 16, %s20
        %p282 = scmp.lt.s32.totalorder %s281, 31
        %s283 = scalar_select %p282, %s281, 31
        %s284 = smul.addr %s283, 4
        %s285 = scalar_lea.vmem %s2, %s284
        %s286 = smul.u32 16, %s20
        %p287 = scmp.lt.s32.totalorder %s19, 1
        %s288 = scalar_select %p287, %s19, 1
        %s289 = smul.addr %s288, 4
        %s290 = scalar_lea.vmem %s4, %s289
        %p292 = scmp.eq.s32.totalorder %s20, 0
        // Predicated region
        $region78: #{contra_module_forward.1} parent=72 // pred_check
          %p293 = pneg %p292
        $region79: #{contra_module_forward.1} parent=72 // pred_check_branch
          %295 = sbr.rel (%p293) target = $region81
        $region80: #{contra_module_forward.1} parent=72 // pred_region
          %vm296 = vcmask 519168
          %297 = vst.msk [vmem:[#allocation2] sm:$0xf] %vm296, 0.0
        $region81: #{contra_module_forward.1} parent=72 // pred_fallthru
          _
        %v298 = vld [vmem:[%s1] sm:$0x3]
        %v299 = vld [vmem:[%s254] sm:$0xf]
        %v300 = vld [vmem:[%s254 + $0x4] sm:$0xf]
        %v301 = vld [vmem:[%s254 + $0x8] sm:$0xf]
        %v302 = vld [vmem:[%s254 + $0xc] sm:$0xf]
        %v303 = vld [vmem:[%s254 + $0x10] sm:$0x3]
        %v309 = vunpack.c.l.b16 %v299
        %v310 = vunpack.c.l.b16 %v300
        %v311 = vunpack.c.l.b16 %v301
        %v312 = vunpack.c.l.b16 %v302
        %v313 = vunpack.c.l.b16 %v303
        %v314 = vpack.c.b16 %v310, %v309
        %v315 = vpack.c.b16 %v312, %v311
        %v316 = vpack.c.b16 %v313, %v313
        %vm319 = vcmask 293888
        %v321 = vsel %vm319, %v298, 0
        %vm323 = vcmask 1041408
        %v325 = vsel %vm323, %v316, 0
        %327 = vmatprep.subr.bf16.mxu0 0
        %328 = vmatpush1.bf16.msra.mxu0 %v314
        %329 = vmatprep.subr.bf16.mxu0 0
        %330 = vmatpush1.bf16.msra.mxu0 %v315
        %331 = vmatprep.subr.bf16.mxu0 0
        %332 = vmatpush1.bf16.msra.mxu0 %v325
        %333 = vmatprep.subr.bf16.mxu0 0
        %334 = vmatpush1.bf16.msra.mxu0 0
        %335 = vmatprep.subr.bf16.mxu0 0
        %336 = vmatpush1.bf16.msra.mxu0 0
        %337 = vmatprep.subr.bf16.mxu0 0
        %338 = vmatpush1.bf16.msra.mxu0 0
        %339 = vmatprep.subr.bf16.mxu0 0
        %340 = vmatpush1.bf16.msra.mxu0 0
        %341 = vmatprep.subr.bf16.mxu0 0
        %342 = vmatpush1.bf16.msra.mxu0 0
        %343 = vmatprep.subr.bf16.mxu0 0
        %344 = vmatpush1.bf16.msra.mxu0 0
        %345 = vmatprep.subr.bf16.mxu0 0
        %346 = vmatpush1.bf16.msra.mxu0 0
        %347 = vmatprep.subr.bf16.mxu0 0
        %348 = vmatpush1.bf16.msra.mxu0 0
        %349 = vmatprep.subr.bf16.mxu0 0
        %350 = vmatpush1.bf16.msra.mxu0 0
        %351 = vmatprep.subr.bf16.mxu0 0
        %352 = vmatpush1.bf16.msra.mxu0 0
        %353 = vmatprep.subr.bf16.mxu0 0
        %354 = vmatpush1.bf16.msra.mxu0 0
        %355 = vmatprep.subr.bf16.mxu0 0
        %356 = vmatpush1.bf16.msra.mxu0 0
        %357 = vmatprep.subr.bf16.mxu0 0
        %358 = vmatpush1.bf16.msra.mxu0 0
        %359 = vmatprep.mubr.bf16.mxu0 0
        %360 = vmatmul.mubr.bf16.gmra.mrb[0].mxu0 %v321
        %v361 = vpop.f32.mrb[0].mxu0
        %v362 = vadd.f32 0.0, %v361
        %v363 = vpop.f32.mrb[0].mxu0
        %v364 = vpop.f32.mrb[0].mxu0
        %v365 = vpop.f32.mrb[0].mxu0
        %366 = vdwg.mxu0
        %v367 = vxor.u32 %v362, 2147483648
        %v368 = vmul.f32 %v367, 1.442695
        %v369 = vpow.pop %v368
        %v370 = vadd.f32 %v369, 1.0
        %v371 = vrcp.pop %v370
        %v372 = vmul.f32 1.0, %v371
        %v373 = vpack.c.bf16 %v372, %v372
        %v374 = vld [vmem:[#allocation2] sm:$0xf]
        %v375 = vld [vmem:[%s285] sm:$0xf]
        %v376 = vld [vmem:[%s285 + $0x4] sm:$0xf]
        %v377 = vld [vmem:[%s285 + $0x8] sm:$0xf]
        %v378 = vld [vmem:[%s285 + $0xc] sm:$0xf]
        %v379 = vld [vmem:[%s285 + $0x10] sm:$0xf]
        %v380 = vld [vmem:[%s285 + $0x14] sm:$0xf]
        %v381 = vld [vmem:[%s285 + $0x18] sm:$0xf]
        %v382 = vld [vmem:[%s285 + $0x1c] sm:$0xf]
        %v383 = vld [vmem:[%s285 + $0x20] sm:$0xf]
        %v384 = vld [vmem:[%s285 + $0x24] sm:$0xf]
        %v385 = vld [vmem:[%s285 + $0x28] sm:$0xf]
        %v386 = vld [vmem:[%s285 + $0x2c] sm:$0xf]
        %v387 = vld [vmem:[%s285 + $0x30] sm:$0xf]
        %v388 = vld [vmem:[%s285 + $0x34] sm:$0xf]
        %v389 = vld [vmem:[%s285 + $0x38] sm:$0xf]
        %v390 = vld [vmem:[%s285 + $0x3c] sm:$0xf]
        %v407 = vunpack.c.l.b16 %v375
        %v408 = vunpack.c.l.b16 %v376
        %v409 = vunpack.c.l.b16 %v377
        %v410 = vunpack.c.l.b16 %v378
        %v411 = vunpack.c.l.b16 %v379
        %v412 = vunpack.c.l.b16 %v380
        %v413 = vunpack.c.l.b16 %v381
        %v414 = vunpack.c.l.b16 %v382
        %v415 = vunpack.c.l.b16 %v383
        %v416 = vunpack.c.l.b16 %v384
        %v417 = vunpack.c.l.b16 %v385
        %v418 = vunpack.c.l.b16 %v386
        %v419 = vunpack.c.l.b16 %v387
        %v420 = vunpack.c.l.b16 %v388
        %v421 = vunpack.c.l.b16 %v389
        %v422 = vunpack.c.l.b16 %v390
        %v423 = vpack.c.b16 %v408, %v407
        %v424 = vpack.c.b16 %v410, %v409
        %v425 = vpack.c.b16 %v412, %v411
        %v426 = vpack.c.b16 %v414, %v413
        %v427 = vpack.c.b16 %v416, %v415
        %v428 = vpack.c.b16 %v418, %v417
        %v429 = vpack.c.b16 %v420, %v419
        %v430 = vpack.c.b16 %v422, %v421
        %439 = vmatprep.subr.bf16.mxu0 0
        %440 = vmatpush1.bf16.msra.mxu0 %v423
        %441 = vmatprep.subr.bf16.mxu0 0
        %442 = vmatpush1.bf16.msra.mxu0 %v424
        %443 = vmatprep.subr.bf16.mxu0 0
        %444 = vmatpush1.bf16.msra.mxu0 %v425
        %445 = vmatprep.subr.bf16.mxu0 0
        %446 = vmatpush1.bf16.msra.mxu0 %v426
        %447 = vmatprep.subr.bf16.mxu0 0
        %448 = vmatpush1.bf16.msra.mxu0 %v427
        %449 = vmatprep.subr.bf16.mxu0 0
        %450 = vmatpush1.bf16.msra.mxu0 %v428
        %451 = vmatprep.subr.bf16.mxu0 0
        %452 = vmatpush1.bf16.msra.mxu0 %v429
        %453 = vmatprep.subr.bf16.mxu0 0
        %454 = vmatpush1.bf16.msra.mxu0 %v430
        %455 = vmatprep.subr.bf16.mxu0 0
        %456 = vmatpush1.bf16.msra.mxu0 0
        %457 = vmatprep.subr.bf16.mxu0 0
        %458 = vmatpush1.bf16.msra.mxu0 0
        %459 = vmatprep.subr.bf16.mxu0 0
        %460 = vmatpush1.bf16.msra.mxu0 0
        %461 = vmatprep.subr.bf16.mxu0 0
        %462 = vmatpush1.bf16.msra.mxu0 0
        %463 = vmatprep.subr.bf16.mxu0 0
        %464 = vmatpush1.bf16.msra.mxu0 0
        %465 = vmatprep.subr.bf16.mxu0 0
        %466 = vmatpush1.bf16.msra.mxu0 0
        %467 = vmatprep.subr.bf16.mxu0 0
        %468 = vmatpush1.bf16.msra.mxu0 0
        %469 = vmatprep.subr.bf16.mxu0 0
        %470 = vmatpush1.bf16.msra.mxu0 0
        %471 = vmatprep.mubr.bf16.mxu0 0
        %472 = vmatmul.mubr.bf16.gmra.mrb[0].mxu0 %v373
        %v473 = vpop.f32.mrb[0].mxu0
        %v474 = vadd.f32 0.0, %v473
        %v475 = vpop.f32.mrb[0].mxu0
        %v476 = vpop.f32.mrb[0].mxu0
        %v477 = vpop.f32.mrb[0].mxu0
        %478 = vdwg.mxu0
        %v479 = vadd.f32 %v374, %v474
        %vm480 = vcmask 519168
        %481 = vst.msk [vmem:[#allocation2] sm:$0xf] %vm480, %v479
        %p482 = scmp.eq.s32.totalorder %s20, 1
        // Predicated region
        $region82: #{contra_module_forward.1} parent=72 // pred_check
          %p483 = pneg %p482
        $region83: #{contra_module_forward.1} parent=72 // pred_check_branch
          %485 = sbr.rel (%p483) target = $region85
        $region84: #{contra_module_forward.1} parent=72 // pred_region
          %v486 = vld [vmem:[%s3] sm:$0x3]
          %v487 = vld [vmem:[#allocation2] sm:$0xf]
          %v488 = vlaneseq
          %v489 = vshrl.u32 %v488, 7
          %v490 = vsub.s32 0, %v489
          %v491 = vrot.slane %v486, %v490
          %v492 = vmul.f32 %v487, %v491
          %v493 = vlaneseq
          %v494 = vshrl.u32 %v493, 7
          %v495 = vsub.s32 1, %v494
          %v496 = vrot.slane %v486, %v495
          %v497 = vadd.f32 %v492, %v496
          %v498 = vmax.f32 %v497, 0.0
          %499 = vst.msk [vmem:[%s290] sm:$0xf] %vm480, %v498
        $region85: #{contra_module_forward.1} parent=72 // pred_fallthru
          _
        %p500 = scmp.lt.s32.totalorder %s19, 1
        %s501 = scalar_select %p500, %s19, 1
        %s502 = smul.addr %s501, 4
        %s503 = scalar_lea.vmem %s4, %s502
        // Predicated region
        $region86: #{contra_module_forward.1} parent=72 // pred_check
          %p504 = pneg %p141
        $region87: #{contra_module_forward.1} parent=72 // pred_check_branch
          %506 = sbr.rel (%p504) target = $region89
        $region88: #{contra_module_forward.1} parent=72 // pred_region
          _
        $region89: #{contra_module_forward.1} parent=72 // pred_fallthru
          _
      $region73: #{contra_module_forward.1} parent=5 // pred_fallthru
        _
      %p507 = scmp.le.s32.totalorder 2, %s10
      // Predicated region
      $region90: #{contra_module_forward.1} parent=5 // pred_check
        %p508 = pneg %p507
      $region91: #{contra_module_forward.1} parent=5 // pred_check_branch
        %510 = sbr.rel (%p508) target = $region93
      $region92: #{contra_module_forward.1} parent=5 // pred_region
        %s511 = ssub.s32 %s10, 2
        // Predicated region
        $region94: #{contra_module_forward.1} parent=92 // pred_check
          %p512 = pneg %p147
        $region95: #{contra_module_forward.1} parent=92 // pred_check_branch
          %514 = sbr.rel (%p512) target = $region97
        $region96: #{contra_module_forward.1} parent=92 // pred_region
          %p515 = scmp.lt.s32.totalorder %s21, 1
          %s516 = scalar_select %p515, %s21, 1
          %s517 = smul.addr %s516, 4
          %s518 = scalar_lea.vmem %s4, %s517
        $region97: #{contra_module_forward.1} parent=92 // pred_fallthru
          _
      $region93: #{contra_module_forward.1} parent=5 // pred_fallthru
        _
    $region6: #{contra_module_forward.1} parent=1 // loop_footer
      %s14 = sadd.s32 1, %s10
    $region7: #{contra_module_forward.1} parent=1 // loop_footer_branch
      %9 = sbr.rel target = $region3
    $region8: #{contra_module_forward.1} parent=1 // loop_exit
      _

</llo_original>
